<compile_context>
chip_gen: v7x
topology: tpu7x:2x2x1
jax: 0.10.0
libtpu: 0.0.40
codegen_flags: <defaults>
</compile_context>

<pallas_src>
import functools
import re

import jax
import jax.numpy as jnp
from jax.experimental import pallas as pl
from jax.experimental.pallas import tpu as pltpu


# ----------------------------------------------------------------------------
# Generation-aware VMEM sizing.
# ----------------------------------------------------------------------------
def _vmem_budget_and_cap():
    """(block_budget, vmem_limit_cap) in bytes.

    block_budget bounds the double-buffered in+out block footprint (~40% of
    physical per-core VMEM: ~51 MiB on v5e/v6e, ~25 MiB on v7x).
    vmem_limit_cap is the hard cap handed to vmem_limit_bytes (physical
    capacity minus 4 MiB headroom — never above physical, fixing the v7x
    correctness concern).
    """
    try:
        cap = int(pltpu.get_tpu_info().vmem_capacity_bytes)
    except Exception:  # not queryable: assume the smallest generation (v7x)
        cap = 64 * 1024 * 1024
    budget = max((2 * cap) // 5, 8 * 1024 * 1024)
    limit_cap = cap - 4 * 1024 * 1024
    return budget, limit_cap


def _clamp_limit(block_bytes, cap):
    limit = block_bytes + 8 * 1024 * 1024        # headroom for Mosaic scratch
    limit = max(limit, 16 * 1024 * 1024)
    return int(min(limit, cap))


def _divisors_desc(n):
    return [d for d in range(n, 0, -1) if n % d == 0]


def _largest_proper_divisor(n):
    for d in range(n // 2, 0, -1):
        if n % d == 0:
            return d
    return 1


def _lane_tile_options(L):
    """Lane tiles: multiples of 128 dividing L (descending, up to full L), or
    the full L when L is not a multiple of 128 (divisibility rule)."""
    if L % 128 == 0:
        return [t for t in range(L, 0, -128) if L % t == 0]
    return [L]


def _sublane_tile_options(S):
    """Sublane tiles: multiples of 8 dividing S (descending), plus full S."""
    opts = [t for t in range(8 * (S // 8), 0, -8) if S % t == 0]
    if not opts or opts[0] != S:
        opts = [S] + opts
    return opts


# ----------------------------------------------------------------------------
# Kernels.
# ----------------------------------------------------------------------------
_UNROLL_LIMIT = 32  # unroll the per-bin reduction for bins up to this many rows


def _pool_sublane_kernel(x_ref, o_ref, *, out_size, mode):
    """Pools the sublane axis (axis 2) of one block.

    x_ref: (1, TC, S, TL); o_ref: (1, TC, out_size, TL).
    Exact AdaptiveAvg/MaxPool2d bins: [floor(i*S/out), ceil((i+1)*S/out)).
    Bin boundaries are static -> unrolled slice / reduce / per-bin store; only
    one bin is live at a time.  Small bins use an unrolled VPU sum/max of
    per-row ref loads (keeps the XLU free); large bins use a single reduce.
    """
    S = x_ref.shape[2]
    for i in range(out_size):
        start = (i * S) // out_size
        end = ((i + 1) * S + out_size - 1) // out_size  # ceil
        n = end - start
        if mode == "avg":
            if n <= _UNROLL_LIMIT:
                acc = x_ref[:, :, start, :].astype(jnp.float32)
                for j in range(1, n):
                    acc = acc + x_ref[:, :, start + j, :].astype(jnp.float32)
            else:
                acc = jnp.sum(
                    x_ref[:, :, pl.ds(start, n), :].astype(jnp.float32), axis=2)
            piece = acc * (1.0 / n)
        else:  # max: exact in the native dtype, no upcast needed
            if n <= _UNROLL_LIMIT:
                piece = x_ref[:, :, start, :]
                for j in range(1, n):
                    piece = jnp.maximum(piece, x_ref[:, :, start + j, :])
            else:
                piece = jnp.max(x_ref[:, :, pl.ds(start, n), :], axis=2)
        o_ref[:, :, i, :] = piece.astype(o_ref.dtype)


def _pool_lane_kernel(x_ref, o_ref, *, out_size, mode):
    """Pools the lane (last) axis of one block.

    x_ref: (1, TC, TH, W); o_ref: (1, TC, TH, out_size).
    Keeps NCHW: the input DMA stays lane-dense over the full (large) W and no
    pre-kernel HBM transpose pass is needed for the columnwise=False path.
    The cross-lane reduce rides the XLU, idle while the kernel is DMA-bound.
    """
    W = x_ref.shape[3]
    for i in range(out_size):
        start = (i * W) // out_size
        end = ((i + 1) * W + out_size - 1) // out_size
        n = end - start
        region = x_ref[:, :, :, pl.ds(start, n)]
        if mode == "avg":
            piece = jnp.sum(region.astype(jnp.float32), axis=3) * (1.0 / n)
        else:
            piece = jnp.max(region, axis=3)
        o_ref[:, :, :, i] = piece.astype(o_ref.dtype)


def _pool_sublane_split_kernel(m_ref, x_ref, o_ref, acc_ref, *, out_size, mode):
    """S-split fallback: the pooled (sublane) axis is tiled across an innermost
    'arbitrary' grid axis and accumulated into an f32 VMEM scratch.

    m_ref: (TS, out_size) pooling matrix, M[r, i] = 1/|bin i| if global row r
    belongs to bin i else 0 (built in XLA, tiny).  Bins may straddle S-tile
    boundaries; the matrix columns make the partial reductions exact.
    x_ref: (1, TC, TS, TL); o_ref / acc_ref: (1, TC, out_size, TL).
    """
    s = pl.program_id(3)

    @pl.when(s == 0)
    def _():
        if mode == "avg":
            acc_ref[...] = jnp.zeros_like(acc_ref)
        else:
            acc_ref[...] = jnp.full(acc_ref.shape, -jnp.inf, dtype=acc_ref.dtype)

    ts = x_ref.shape[2]
    for i in range(out_size):
        col = m_ref[:, pl.ds(i, 1)].reshape(1, 1, ts, 1)   # (1,1,TS,1) weights
        x = x_ref[...].astype(jnp.float32)                  # reload per bin
        if mode == "avg":
            acc_ref[:, :, i, :] += jnp.sum(x * col, axis=2)
        else:
            masked = jnp.where(col > 0.0, x, -jnp.inf)
            acc_ref[:, :, i, :] = jnp.maximum(acc_ref[:, :, i, :],
                                              jnp.max(masked, axis=2))

    @pl.when(s == pl.num_programs(3) - 1)
    def _():
        o_ref[...] = acc_ref[...].astype(o_ref.dtype)


def _pooling_matrix(S, out_size):
    """(S, out_size) f32: 1/|bin i| where row r is a member of bin i, else 0."""
    r = jnp.arange(S, dtype=jnp.int32)[:, None]
    i = jnp.arange(out_size, dtype=jnp.int32)[None, :]
    start = (i * S) // out_size
    end = ((i + 1) * S + out_size - 1) // out_size
    member = (r >= start) & (r < end)
    inv = 1.0 / (end - start).astype(jnp.float32)
    return jnp.where(member, inv, jnp.float32(0.0))


# ----------------------------------------------------------------------------
# Tiling choices.
# ----------------------------------------------------------------------------
def _pick_tiles_sublane(C, S, L, out_size, itemsize, budget):
    """(TC, TL) for the sublane-pool kernel (pooled axis fully resident), or
    None if even the smallest block exceeds the budget (use the S-split path).
    Prefers large lane tiles (long lane-dense DMAs), then large channel tiles.
    """
    lane_opts = _lane_tile_options(L)
    c_opts = _divisors_desc(C)

    def step_bytes(tc, tl):
        return 2 * (tc * S * tl + tc * out_size * tl) * itemsize

    for tl in lane_opts:
        for tc in c_opts:
            if step_bytes(tc, tl) <= budget:
                return tc, tl
    return None


def _pick_tiles_split(C, S, L, out_size, itemsize, budget):
    """(TC, TS, TL) for the S-split fallback kernel."""
    lane_opts = _lane_tile_options(L)
    s_opts = _sublane_tile_options(S)
    c_opts = _divisors_desc(C)

    def step_bytes(tc, ts, tl):
        in_b = 2 * tc * ts * tl * itemsize
        out_b = 2 * tc * out_size * tl * itemsize
        acc_b = tc * out_size * tl * 4            # f32 accumulator (1 buffer)
        m_b = 2 * ts * out_size * 4               # pooling-matrix block
        return in_b + out_b + acc_b + m_b

    for tl in lane_opts:
        for ts in s_opts:
            for tc in c_opts:
                if step_bytes(tc, ts, tl) <= budget:
                    return tc, ts, tl
    # TODO(synk): truly gigantic S*L (L not a multiple of 128) would also need
    # an L-split; unreachable for realistic image sizes.
    return 1, s_opts[-1], lane_opts[-1]


# ----------------------------------------------------------------------------
# Wrappers.
# ----------------------------------------------------------------------------
def adaptive_pool_sublane(x, out_size, mode, *, block_budget=None):
    """x: (N, C, S, L). Adaptive avg/max pool of axis 2 (sublane) to out_size."""
    assert x.ndim == 4
    N, C, S, L = x.shape
    itemsize = jnp.dtype(x.dtype).itemsize
    budget, limit_cap = _vmem_budget_and_cap()
    if block_budget is not None:
        budget = block_budget

    picked = _pick_tiles_sublane(C, S, L, out_size, itemsize, budget)
    if picked is not None:
        TC, TL = picked
        # Keep both v7x TensorCores busy: guarantee >= 2 grid steps if possible.
        if N * (C // TC) * (L // TL) < 2:
            if TL % 256 == 0:
                TL //= 2
            elif TC > 1:
                TC = _largest_proper_divisor(TC)
        grid = (N, C // TC, L // TL)
        blocks = 2 * (TC * S * TL + TC * out_size * TL) * itemsize
        kernel = functools.partial(_pool_sublane_kernel, out_size=out_size, mode=mode)
        return pl.pallas_call(
            kernel,
            out_shape=jax.ShapeDtypeStruct((N, C, out_size, L), x.dtype),
            grid=grid,
            in_specs=[pl.BlockSpec((1, TC, S, TL), lambda n, c, l: (n, c, 0, l))],
            out_specs=pl.BlockSpec((1, TC, out_size, TL),
                                   lambda n, c, l: (n, c, 0, l)),
            compiler_params=pltpu.CompilerParams(
                dimension_semantics=("parallel", "parallel", "parallel"),
                vmem_limit_bytes=_clamp_limit(blocks, limit_cap),
            ),
        )(x)

    # --- S-split fallback (huge S*L blocks that would not fit VMEM) ---
    TC, TS, TL = _pick_tiles_split(C, S, L, out_size, itemsize, budget)
    grid = (N, C // TC, L // TL, S // TS)
    m = _pooling_matrix(S, out_size)
    blocks = (2 * (TC * TS * TL + TC * out_size * TL) * itemsize
              + TC * out_size * TL * 4 + 2 * TS * out_size * 4)
    kernel = functools.partial(_pool_sublane_split_kernel,
                               out_size=out_size, mode=mode)
    return pl.pallas_call(
        kernel,
        out_shape=jax.ShapeDtypeStruct((N, C, out_size, L), x.dtype),
        grid=grid,
        in_specs=[
            pl.BlockSpec((TS, out_size), lambda n, c, l, s: (s, 0)),
            pl.BlockSpec((1, TC, TS, TL), lambda n, c, l, s: (n, c, s, l)),
        ],
        out_specs=pl.BlockSpec((1, TC, out_size, TL),
                               lambda n, c, l, s: (n, c, 0, l)),
        scratch_shapes=[pltpu.VMEM((1, TC, out_size, TL), jnp.float32)],
        compiler_params=pltpu.CompilerParams(
            dimension_semantics=("parallel", "parallel", "parallel", "arbitrary"),
            vmem_limit_bytes=_clamp_limit(blocks, limit_cap),
        ),
    )(m, x)


def adaptive_pool_lane(x, out_size, mode, *, block_budget=None):
    """x: (N, C, H, W). Adaptive avg/max pool of axis 3 (lane) to out_size.

    Keeps NCHW so the input DMA is lane-dense over W (no pre-kernel HBM
    transpose pass); the pooled axis stays fully resident, which is cheap
    because the sublane axis H can be tiled down to 8 rows.
    """
    assert x.ndim == 4
    N, C, H, W = x.shape
    itemsize = jnp.dtype(x.dtype).itemsize
    budget, limit_cap = _vmem_budget_and_cap()
    if block_budget is not None:
        budget = block_budget

    h_opts = _sublane_tile_options(H)
    c_opts = _divisors_desc(C)

    def step_bytes(tc, th):
        return 2 * (tc * th * W + tc * th * out_size) * itemsize

    TC, TH = 1, h_opts[-1]
    done = False
    for th in h_opts:
        for tc in c_opts:
            if step_bytes(tc, th) <= budget:
                TC, TH = tc, th
                done = True
                break
        if done:
            break

    if N * (C // TC) * (H // TH) < 2:          # v7x megacore: >= 2 grid steps
        if TH % 16 == 0:
            TH //= 2
        elif TC > 1:
            TC = _largest_proper_divisor(TC)

    grid = (N, C // TC, H // TH)
    kernel = functools.partial(_pool_lane_kernel, out_size=out_size, mode=mode)
    return pl.pallas_call(
        kernel,
        out_shape=jax.ShapeDtypeStruct((N, C, H, out_size), x.dtype),
        grid=grid,
        in_specs=[pl.BlockSpec((1, TC, TH, W), lambda n, c, h: (n, c, h, 0))],
        out_specs=pl.BlockSpec((1, TC, TH, out_size),
                               lambda n, c, h: (n, c, h, 0)),
        compiler_params=pltpu.CompilerParams(
            dimension_semantics=("parallel", "parallel", "parallel"),
            vmem_limit_bytes=_clamp_limit(step_bytes(TC, TH), limit_cap),
        ),
    )(x)


def image_to_sequence(x, columnwise=True):
    """laia.data.image_to_sequence for dense tensors (return_packed with no
    per-image lengths degenerates to the plain (T, N, F) sequence tensor)."""
    assert x.ndim == 4
    n, c, h, w = x.shape
    if columnwise:
        # permute(3, 0, 1, 2).view(w, n, h * c)
        return jnp.transpose(x, (3, 0, 1, 2)).reshape(w, n, c * h)
    # permute(2, 0, 1, 3).view(h, n, w * c)
    return jnp.transpose(x, (2, 0, 1, 3)).reshape(h, n, c * w)


class ImagePoolingSequencer:
    def __init__(self, sequencer, columnwise=True):
        m = re.match(r"^(avgpool|maxpool|none)-([1-9][0-9]*)$", sequencer)
        if m is None:
            raise ValueError("The value of the sequencer argument is not valid")
        self._columnwise = columnwise
        self._fix_size = int(m.group(2))
        self._mode = m.group(1)

    @property
    def columnwise(self):
        return self._columnwise

    @property
    def fix_size(self):
        return self._fix_size

    def __call__(self, x):
        if self._mode in ("avgpool", "maxpool"):
            mode = "avg" if self._mode == "avgpool" else "max"
            if self._columnwise:
                # AdaptiveXPool2d((fix, None)): pool H (sublane axis of NCHW).
                y = adaptive_pool_sublane(x, self._fix_size, mode)  # (N,C,fix,W)
            else:
                # AdaptiveXPool2d((None, fix)): pool W in place (lane axis),
                # no HBM transpose pass.
                y = adaptive_pool_lane(x, self._fix_size, mode)     # (N,C,H,fix)
        else:  # "none": shape check only, like the PyTorch module
            axis = 2 if self._columnwise else 3
            if x.shape[axis] != self._fix_size:
                dim_name = "height" if self._columnwise else "width"
                raise ValueError(
                    f"Input images must have a fixed {dim_name} of "
                    f"{self._fix_size} pixels, size is {x.shape}")
            y = x
        # TODO(synk): pack_padded_sequence / PaddedTensor (return_packed with
        # per-image lengths) has no Pallas/JAX equivalent; dense output only.
        return image_to_sequence(y, columnwise=self._columnwise)


if __name__ == "__main__":
    key = jax.random.PRNGKey(0)
    N, C, H, W = 2, 4, 16, 16
    x = jax.random.normal(key, (N, C, H, W), dtype=jnp.float32)

    def ref_pool(v, out_size, axis, mode):
        S = v.shape[axis]
        pieces = []
        for i in range(out_size):
            start = (i * S) // out_size
            end = ((i + 1) * S + out_size - 1) // out_size
            region = jax.lax.slice_in_dim(v, start, end, axis=axis)
            if mode == "avg":
                pieces.append(jnp.mean(region, axis=axis, keepdims=True))
            else:
                pieces.append(jnp.max(region, axis=axis, keepdims=True))
        return jnp.concatenate(pieces, axis=axis)

    # 1) avgpool-8, columnwise (pool H 16 -> 8): sublane kernel.
    seq = ImagePoolingSequencer("avgpool-8", columnwise=True)
    y = jax.block_until_ready(seq(x))
    ref = image_to_sequence(ref_pool(x, 8, 2, "avg"), columnwise=True)
    assert y.shape == (W, N, C * 8)
    assert jnp.allclose(y, ref, atol=1e-5, rtol=1e-5)

    # 2) maxpool-8, row-wise (pool W 16 -> 8): lane kernel, no HBM transpose.
    seq = ImagePoolingSequencer("maxpool-8", columnwise=False)
    y = jax.block_until_ready(seq(x))
    ref = image_to_sequence(ref_pool(x, 8, 3, "max"), columnwise=False)
    assert y.shape == (H, N, C * 8)
    assert jnp.allclose(y, ref, atol=1e-5, rtol=1e-5)

    # 3) avgpool-5, row-wise: non-uniform / overlapping lane bins.
    seq = ImagePoolingSequencer("avgpool-5", columnwise=False)
    y = jax.block_until_ready(seq(x))
    ref = image_to_sequence(ref_pool(x, 5, 3, "avg"), columnwise=False)
    assert y.shape == (H, N, C * 5)
    assert jnp.allclose(y, ref, atol=1e-5, rtol=1e-5)

    # 4) maxpool-5, columnwise: non-uniform / overlapping sublane bins.
    seq = ImagePoolingSequencer("maxpool-5", columnwise=True)
    y = jax.block_until_ready(seq(x))
    ref = image_to_sequence(ref_pool(x, 5, 2, "max"), columnwise=True)
    assert y.shape == (W, N, C * 5)
    assert jnp.allclose(y, ref, atol=1e-5, rtol=1e-5)

    # 5) none-16: shape check + sequence reshape only.
    seq = ImagePoolingSequencer("none-16", columnwise=True)
    y = jax.block_until_ready(seq(x))
    assert y.shape == (W, N, C * H)
    assert jnp.allclose(y, image_to_sequence(x, columnwise=True))

    # 6) S-split fallback (tiny forced budget; bins straddle S-tile boundaries).
    x2 = jax.random.normal(jax.random.PRNGKey(0), (1, 2, 24, 16), jnp.float32)
    for mode in ("avg", "max"):
        y2 = jax.block_until_ready(
            adaptive_pool_sublane(x2, 8, mode, block_budget=4000))
        ref2 = ref_pool(x2, 8, 2, mode)
        assert y2.shape == (1, 2, 8, 16)
        assert jnp.allclose(y2, ref2, atol=1e-5, rtol=1e-5)

    print("KERNEL_OK")
</pallas_src>

<mosaic_0001>
module attributes {stable_mosaic.version = 11 : i64} {
  func.func @_pool_sublane_kernel(%arg0: i32, %arg1: i32, %arg2: i32, %arg3: memref<1x4x16x16xf32, #tpu.memory_space<vmem>>, %arg4: memref<1x4x8x16xf32, #tpu.memory_space<vmem>>) attributes {dimension_semantics = [#tpu.dimension_semantics<parallel>, #tpu.dimension_semantics<parallel>, #tpu.dimension_semantics<parallel>], iteration_bounds = array<i64: 2, 1, 1>, scalar_prefetch = 0 : i64, scratch_operands = 0 : i64, tpu.core_type = #tpu.core_type<tc>, window_params = [{transform_indices = @transform_0, window_bounds = array<i64: 1, 4, 16, 16>}, {transform_indices = @transform_1, window_bounds = array<i64: 1, 4, 8, 16>}]} {
    %c0 = arith.constant 0 : index
    %c0_0 = arith.constant 0 : index
    %c0_1 = arith.constant 0 : index
    %c0_2 = arith.constant 0 : index
    %0 = vector.load %arg3[%c0, %c0_0, %c0_1, %c0_2] : memref<1x4x16x16xf32, #tpu.memory_space<vmem>>, vector<1x4x1x16xf32>
    %1 = vector.shape_cast %0 : vector<1x4x1x16xf32> to vector<1x4x16xf32>
    %c0_3 = arith.constant 0 : index
    %c0_4 = arith.constant 0 : index
    %c1 = arith.constant 1 : index
    %c0_5 = arith.constant 0 : index
    %2 = vector.load %arg3[%c0_3, %c0_4, %c1, %c0_5] : memref<1x4x16x16xf32, #tpu.memory_space<vmem>>, vector<1x4x1x16xf32>
    %3 = vector.shape_cast %2 : vector<1x4x1x16xf32> to vector<1x4x16xf32>
    %4 = arith.addf %1, %3 : vector<1x4x16xf32>
    %cst = arith.constant 5.000000e-01 : f32
    %5 = vector.broadcast %cst : f32 to vector<1x4x16xf32>
    %6 = arith.mulf %4, %5 : vector<1x4x16xf32>
    %c0_6 = arith.constant 0 : index
    %c0_7 = arith.constant 0 : index
    %c0_8 = arith.constant 0 : index
    %c0_9 = arith.constant 0 : index
    %7 = vector.load %arg4[%c0_6, %c0_7, %c0_8, %c0_9] : memref<1x4x8x16xf32, #tpu.memory_space<vmem>>, vector<1x4x1x16xf32>
    %8 = vector.shape_cast %7 : vector<1x4x1x16xf32> to vector<1x4x16xf32>
    %9 = vector.shape_cast %6 : vector<1x4x16xf32> to vector<1x4x1x16xf32>
    tpu.vector_store %arg4[%c0_6, %c0_7, %c0_8, %c0_9], %9 {strides = array<i32>} : memref<1x4x8x16xf32, #tpu.memory_space<vmem>>, vector<1x4x1x16xf32>,
    %c0_10 = arith.constant 0 : index
    %c0_11 = arith.constant 0 : index
    %c2 = arith.constant 2 : index
    %c0_12 = arith.constant 0 : index
    %10 = vector.load %arg3[%c0_10, %c0_11, %c2, %c0_12] : memref<1x4x16x16xf32, #tpu.memory_space<vmem>>, vector<1x4x1x16xf32>
    %11 = vector.shape_cast %10 : vector<1x4x1x16xf32> to vector<1x4x16xf32>
    %c0_13 = arith.constant 0 : index
    %c0_14 = arith.constant 0 : index
    %c3 = arith.constant 3 : index
    %c0_15 = arith.constant 0 : index
    %12 = vector.load %arg3[%c0_13, %c0_14, %c3, %c0_15] : memref<1x4x16x16xf32, #tpu.memory_space<vmem>>, vector<1x4x1x16xf32>
    %13 = vector.shape_cast %12 : vector<1x4x1x16xf32> to vector<1x4x16xf32>
    %14 = arith.addf %11, %13 : vector<1x4x16xf32>
    %cst_16 = arith.constant 5.000000e-01 : f32
    %15 = vector.broadcast %cst_16 : f32 to vector<1x4x16xf32>
    %16 = arith.mulf %14, %15 : vector<1x4x16xf32>
    %c0_17 = arith.constant 0 : index
    %c0_18 = arith.constant 0 : index
    %c1_19 = arith.constant 1 : index
    %c0_20 = arith.constant 0 : index
    %17 = vector.load %arg4[%c0_17, %c0_18, %c1_19, %c0_20] : memref<1x4x8x16xf32, #tpu.memory_space<vmem>>, vector<1x4x1x16xf32>
    %18 = vector.shape_cast %17 : vector<1x4x1x16xf32> to vector<1x4x16xf32>
    %19 = vector.shape_cast %16 : vector<1x4x16xf32> to vector<1x4x1x16xf32>
    tpu.vector_store %arg4[%c0_17, %c0_18, %c1_19, %c0_20], %19 {strides = array<i32>} : memref<1x4x8x16xf32, #tpu.memory_space<vmem>>, vector<1x4x1x16xf32>,
    %c0_21 = arith.constant 0 : index
    %c0_22 = arith.constant 0 : index
    %c4 = arith.constant 4 : index
    %c0_23 = arith.constant 0 : index
    %20 = vector.load %arg3[%c0_21, %c0_22, %c4, %c0_23] : memref<1x4x16x16xf32, #tpu.memory_space<vmem>>, vector<1x4x1x16xf32>
    %21 = vector.shape_cast %20 : vector<1x4x1x16xf32> to vector<1x4x16xf32>
    %c0_24 = arith.constant 0 : index
    %c0_25 = arith.constant 0 : index
    %c5 = arith.constant 5 : index
    %c0_26 = arith.constant 0 : index
    %22 = vector.load %arg3[%c0_24, %c0_25, %c5, %c0_26] : memref<1x4x16x16xf32, #tpu.memory_space<vmem>>, vector<1x4x1x16xf32>
    %23 = vector.shape_cast %22 : vector<1x4x1x16xf32> to vector<1x4x16xf32>
    %24 = arith.addf %21, %23 : vector<1x4x16xf32>
    %cst_27 = arith.constant 5.000000e-01 : f32
    %25 = vector.broadcast %cst_27 : f32 to vector<1x4x16xf32>
    %26 = arith.mulf %24, %25 : vector<1x4x16xf32>
    %c0_28 = arith.constant 0 : index
    %c0_29 = arith.constant 0 : index
    %c2_30 = arith.constant 2 : index
    %c0_31 = arith.constant 0 : index
    %27 = vector.load %arg4[%c0_28, %c0_29, %c2_30, %c0_31] : memref<1x4x8x16xf32, #tpu.memory_space<vmem>>, vector<1x4x1x16xf32>
    %28 = vector.shape_cast %27 : vector<1x4x1x16xf32> to vector<1x4x16xf32>
    %29 = vector.shape_cast %26 : vector<1x4x16xf32> to vector<1x4x1x16xf32>
    tpu.vector_store %arg4[%c0_28, %c0_29, %c2_30, %c0_31], %29 {strides = array<i32>} : memref<1x4x8x16xf32, #tpu.memory_space<vmem>>, vector<1x4x1x16xf32>,
    %c0_32 = arith.constant 0 : index
    %c0_33 = arith.constant 0 : index
    %c6 = arith.constant 6 : index
    %c0_34 = arith.constant 0 : index
    %30 = vector.load %arg3[%c0_32, %c0_33, %c6, %c0_34] : memref<1x4x16x16xf32, #tpu.memory_space<vmem>>, vector<1x4x1x16xf32>
    %31 = vector.shape_cast %30 : vector<1x4x1x16xf32> to vector<1x4x16xf32>
    %c0_35 = arith.constant 0 : index
    %c0_36 = arith.constant 0 : index
    %c7 = arith.constant 7 : index
    %c0_37 = arith.constant 0 : index
    %32 = vector.load %arg3[%c0_35, %c0_36, %c7, %c0_37] : memref<1x4x16x16xf32, #tpu.memory_space<vmem>>, vector<1x4x1x16xf32>
    %33 = vector.shape_cast %32 : vector<1x4x1x16xf32> to vector<1x4x16xf32>
    %34 = arith.addf %31, %33 : vector<1x4x16xf32>
    %cst_38 = arith.constant 5.000000e-01 : f32
    %35 = vector.broadcast %cst_38 : f32 to vector<1x4x16xf32>
    %36 = arith.mulf %34, %35 : vector<1x4x16xf32>
    %c0_39 = arith.constant 0 : index
    %c0_40 = arith.constant 0 : index
    %c3_41 = arith.constant 3 : index
    %c0_42 = arith.constant 0 : index
    %37 = vector.load %arg4[%c0_39, %c0_40, %c3_41, %c0_42] : memref<1x4x8x16xf32, #tpu.memory_space<vmem>>, vector<1x4x1x16xf32>
    %38 = vector.shape_cast %37 : vector<1x4x1x16xf32> to vector<1x4x16xf32>
    %39 = vector.shape_cast %36 : vector<1x4x16xf32> to vector<1x4x1x16xf32>
    tpu.vector_store %arg4[%c0_39, %c0_40, %c3_41, %c0_42], %39 {strides = array<i32>} : memref<1x4x8x16xf32, #tpu.memory_space<vmem>>, vector<1x4x1x16xf32>,
    %c0_43 = arith.constant 0 : index
    %c0_44 = arith.constant 0 : index
    %c8 = arith.constant 8 : index
    %c0_45 = arith.constant 0 : index
    %40 = vector.load %arg3[%c0_43, %c0_44, %c8, %c0_45] : memref<1x4x16x16xf32, #tpu.memory_space<vmem>>, vector<1x4x1x16xf32>
    %41 = vector.shape_cast %40 : vector<1x4x1x16xf32> to vector<1x4x16xf32>
    %c0_46 = arith.constant 0 : index
    %c0_47 = arith.constant 0 : index
    %c9 = arith.constant 9 : index
    %c0_48 = arith.constant 0 : index
    %42 = vector.load %arg3[%c0_46, %c0_47, %c9, %c0_48] : memref<1x4x16x16xf32, #tpu.memory_space<vmem>>, vector<1x4x1x16xf32>
    %43 = vector.shape_cast %42 : vector<1x4x1x16xf32> to vector<1x4x16xf32>
    %44 = arith.addf %41, %43 : vector<1x4x16xf32>
    %cst_49 = arith.constant 5.000000e-01 : f32
    %45 = vector.broadcast %cst_49 : f32 to vector<1x4x16xf32>
    %46 = arith.mulf %44, %45 : vector<1x4x16xf32>
    %c0_50 = arith.constant 0 : index
    %c0_51 = arith.constant 0 : index
    %c4_52 = arith.constant 4 : index
    %c0_53 = arith.constant 0 : index
    %47 = vector.load %arg4[%c0_50, %c0_51, %c4_52, %c0_53] : memref<1x4x8x16xf32, #tpu.memory_space<vmem>>, vector<1x4x1x16xf32>
    %48 = vector.shape_cast %47 : vector<1x4x1x16xf32> to vector<1x4x16xf32>
    %49 = vector.shape_cast %46 : vector<1x4x16xf32> to vector<1x4x1x16xf32>
    tpu.vector_store %arg4[%c0_50, %c0_51, %c4_52, %c0_53], %49 {strides = array<i32>} : memref<1x4x8x16xf32, #tpu.memory_space<vmem>>, vector<1x4x1x16xf32>,
    %c0_54 = arith.constant 0 : index
    %c0_55 = arith.constant 0 : index
    %c10 = arith.constant 10 : index
    %c0_56 = arith.constant 0 : index
    %50 = vector.load %arg3[%c0_54, %c0_55, %c10, %c0_56] : memref<1x4x16x16xf32, #tpu.memory_space<vmem>>, vector<1x4x1x16xf32>
    %51 = vector.shape_cast %50 : vector<1x4x1x16xf32> to vector<1x4x16xf32>
    %c0_57 = arith.constant 0 : index
    %c0_58 = arith.constant 0 : index
    %c11 = arith.constant 11 : index
    %c0_59 = arith.constant 0 : index
    %52 = vector.load %arg3[%c0_57, %c0_58, %c11, %c0_59] : memref<1x4x16x16xf32, #tpu.memory_space<vmem>>, vector<1x4x1x16xf32>
    %53 = vector.shape_cast %52 : vector<1x4x1x16xf32> to vector<1x4x16xf32>
    %54 = arith.addf %51, %53 : vector<1x4x16xf32>
    %cst_60 = arith.constant 5.000000e-01 : f32
    %55 = vector.broadcast %cst_60 : f32 to vector<1x4x16xf32>
    %56 = arith.mulf %54, %55 : vector<1x4x16xf32>
    %c0_61 = arith.constant 0 : index
    %c0_62 = arith.constant 0 : index
    %c5_63 = arith.constant 5 : index
    %c0_64 = arith.constant 0 : index
    %57 = vector.load %arg4[%c0_61, %c0_62, %c5_63, %c0_64] : memref<1x4x8x16xf32, #tpu.memory_space<vmem>>, vector<1x4x1x16xf32>
    %58 = vector.shape_cast %57 : vector<1x4x1x16xf32> to vector<1x4x16xf32>
    %59 = vector.shape_cast %56 : vector<1x4x16xf32> to vector<1x4x1x16xf32>
    tpu.vector_store %arg4[%c0_61, %c0_62, %c5_63, %c0_64], %59 {strides = array<i32>} : memref<1x4x8x16xf32, #tpu.memory_space<vmem>>, vector<1x4x1x16xf32>,
    %c0_65 = arith.constant 0 : index
    %c0_66 = arith.constant 0 : index
    %c12 = arith.constant 12 : index
    %c0_67 = arith.constant 0 : index
    %60 = vector.load %arg3[%c0_65, %c0_66, %c12, %c0_67] : memref<1x4x16x16xf32, #tpu.memory_space<vmem>>, vector<1x4x1x16xf32>
    %61 = vector.shape_cast %60 : vector<1x4x1x16xf32> to vector<1x4x16xf32>
    %c0_68 = arith.constant 0 : index
    %c0_69 = arith.constant 0 : index
    %c13 = arith.constant 13 : index
    %c0_70 = arith.constant 0 : index
    %62 = vector.load %arg3[%c0_68, %c0_69, %c13, %c0_70] : memref<1x4x16x16xf32, #tpu.memory_space<vmem>>, vector<1x4x1x16xf32>
    %63 = vector.shape_cast %62 : vector<1x4x1x16xf32> to vector<1x4x16xf32>
    %64 = arith.addf %61, %63 : vector<1x4x16xf32>
    %cst_71 = arith.constant 5.000000e-01 : f32
    %65 = vector.broadcast %cst_71 : f32 to vector<1x4x16xf32>
    %66 = arith.mulf %64, %65 : vector<1x4x16xf32>
    %c0_72 = arith.constant 0 : index
    %c0_73 = arith.constant 0 : index
    %c6_74 = arith.constant 6 : index
    %c0_75 = arith.constant 0 : index
    %67 = vector.load %arg4[%c0_72, %c0_73, %c6_74, %c0_75] : memref<1x4x8x16xf32, #tpu.memory_space<vmem>>, vector<1x4x1x16xf32>
    %68 = vector.shape_cast %67 : vector<1x4x1x16xf32> to vector<1x4x16xf32>
    %69 = vector.shape_cast %66 : vector<1x4x16xf32> to vector<1x4x1x16xf32>
    tpu.vector_store %arg4[%c0_72, %c0_73, %c6_74, %c0_75], %69 {strides = array<i32>} : memref<1x4x8x16xf32, #tpu.memory_space<vmem>>, vector<1x4x1x16xf32>,
    %c0_76 = arith.constant 0 : index
    %c0_77 = arith.constant 0 : index
    %c14 = arith.constant 14 : index
    %c0_78 = arith.constant 0 : index
    %70 = vector.load %arg3[%c0_76, %c0_77, %c14, %c0_78] : memref<1x4x16x16xf32, #tpu.memory_space<vmem>>, vector<1x4x1x16xf32>
    %71 = vector.shape_cast %70 : vector<1x4x1x16xf32> to vector<1x4x16xf32>
    %c0_79 = arith.constant 0 : index
    %c0_80 = arith.constant 0 : index
    %c15 = arith.constant 15 : index
    %c0_81 = arith.constant 0 : index
    %72 = vector.load %arg3[%c0_79, %c0_80, %c15, %c0_81] : memref<1x4x16x16xf32, #tpu.memory_space<vmem>>, vector<1x4x1x16xf32>
    %73 = vector.shape_cast %72 : vector<1x4x1x16xf32> to vector<1x4x16xf32>
    %74 = arith.addf %71, %73 : vector<1x4x16xf32>
    %cst_82 = arith.constant 5.000000e-01 : f32
    %75 = vector.broadcast %cst_82 : f32 to vector<1x4x16xf32>
    %76 = arith.mulf %74, %75 : vector<1x4x16xf32>
    %c0_83 = arith.constant 0 : index
    %c0_84 = arith.constant 0 : index
    %c7_85 = arith.constant 7 : index
    %c0_86 = arith.constant 0 : index
    %77 = vector.load %arg4[%c0_83, %c0_84, %c7_85, %c0_86] : memref<1x4x8x16xf32, #tpu.memory_space<vmem>>, vector<1x4x1x16xf32>
    %78 = vector.shape_cast %77 : vector<1x4x1x16xf32> to vector<1x4x16xf32>
    %79 = vector.shape_cast %76 : vector<1x4x16xf32> to vector<1x4x1x16xf32>
    tpu.vector_store %arg4[%c0_83, %c0_84, %c7_85, %c0_86], %79 {strides = array<i32>} : memref<1x4x8x16xf32, #tpu.memory_space<vmem>>, vector<1x4x1x16xf32>,
    return
  }
  func.func @transform_0(%arg0: i32, %arg1: i32, %arg2: i32) -> (i32, i32, i32, i32) {
    %c0_i32 = arith.constant 0 : i32
    %c0_i32_0 = arith.constant 0 : i32
    return %arg0, %arg1, %c0_i32, %arg2 : i32, i32, i32, i32
  }
  func.func @transform_1(%arg0: i32, %arg1: i32, %arg2: i32) -> (i32, i32, i32, i32) {
    %c0_i32 = arith.constant 0 : i32
    %c0_i32_0 = arith.constant 0 : i32
    return %arg0, %arg1, %c0_i32, %arg2 : i32, i32, i32, i32
  }
}

</mosaic_0001>

<llo_original>
// kernel: tpu_custom_call.1
$region0: #{tpu_custom_call.1}
  #allocation0 [shape = 'u32[]', space=smem, size = 0x4, offset = 0x4, fixed_abs, tag = 'smem constant byte address 0x4 - core index']
  #allocation1 [shape = 'u32[144,128]{1,0:T(1,128)}', space=vmem, size = 0x12000, scoped, tag = 'internal scratch']
  %s0 = inlined_call_operand.hbm [shape: f32[2,4,16,16], index: 0, kind: input, shape index: {}]
  %s1 = inlined_call_operand.hbm [shape: f32[2,4,8,16], index: 1, kind: output, shape index: {}]
  %s2 = sld [smem:[#allocation0]]
  $region41: #{tpu_custom_call.1} parent=0
    _
  %s4 = ssub.s32 1, %s2
  %s5 = scalar_select 0, %s4, %s2
  $region1: #{tpu_custom_call.1} parent=0
    #allocation2 [shape = 'u8[65536]{0}', space=vmem, size = 0x10000, scoped, tag = 'input window, operand 0']
    #allocation3 [shape = 's32[2]{0}', space=sflag, size = 0x8, scoped, tag = 'scoped memory for tpu_custom_call.1']
    #allocation4 [shape = 's32[2]{0}', space=sflag, size = 0x8, scoped, tag = 'scoped memory for tpu_custom_call.1']
    #allocation5 [shape = 'u8[32768]{0}', space=vmem, size = 0x8000, scoped, tag = 'output window, operand 0']
    %6 = vsyncpa [#allocation3], 0
    %s7 = scalar_lea.sflag [#allocation3], 1
    %8 = vsyncpa %s7, 0
    %9 = vsyncpa [#allocation4], 0
    %s10 = scalar_lea.sflag [#allocation4], 1
    %11 = vsyncpa %s10, 0
    loop: start=0, step=1, limit=4
    $region2: #{tpu_custom_call.1} parent=1 // loop_pre_header
      _
    $region3: #{tpu_custom_call.1} parent=1 // loop_header
      %s13 = sphi 0, %s17
      %p14 = scmp.ge.s32.totalorder %s13, 4
      %s20 = sphi 0, %s39
      %s21 = sphi 0, %s35
      %s22 = sphi 0, %s31
      %s23 = sphi 0, %s20
      %s24 = sphi 0, %s21
      %s25 = sphi 0, %s22
      %s26 = sphi 0, %s23
      %s27 = sphi 0, %s24
      %s28 = sphi 0, %s25
      %s46 = sphi 0, %s48
      %s49 = sphi 0, %s46
      %s50 = sphi 0, %s49
      %s66 = sphi 0, %s50
      %s76 = sphi 0, %s78
      %s79 = sphi 0, %s76
      %s80 = sphi 0, %s79
      %s96 = sphi 0, %s80
    $region4: #{tpu_custom_call.1} parent=1 // loop_header_branch
      %16 = sbr.rel (%p14) target = $region8
    $region5: #{tpu_custom_call.1} parent=1 // loop_body
      %s18 = ssub.s32 %s13, 1
      %s19 = ssub.s32 %s13, 2
      %s29 = sadd.s32 1, %s22
      %p30 = scmp.ge.s32.totalorder %s29, 1
      %s31 = scalar_select %p30, 0, %s29
      %s32 = sadd.s32 1, %s21
      %s33 = scalar_select %p30, %s32, %s21
      %p34 = scmp.ge.s32.totalorder %s33, 1
      %s35 = scalar_select %p34, 0, %s33
      %s36 = sadd.s32 1, %s20
      %s37 = scalar_select %p34, %s36, %s20
      %p38 = scmp.ge.s32.totalorder %s37, 2
      %s39 = scalar_select %p38, 0, %s37
      %s40 = ssub.s32 %s20, %s39
      %s41 = ssub.s32 %s21, %s35
      %s42 = sor.u32 %s40, %s41
      %s43 = ssub.s32 %s22, %s31
      %s44 = sor.u32 %s42, %s43
      %p45 = scmp.eq.s32.totalorder %s44, 0
      %s47 = sadd.s32 %s46, 1
      %s48 = scalar_select %p45, %s46, %s47
      %p51 = pneg %p45
      %p52 = scmp.eq.s32.totalorder %s13, 1
      %p53 = por %p51, %p52
      %p54 = scmp.ne.s32.totalorder %s46, %s49
      %p55 = scmp.eq.s32.totalorder %s13, 0
      %p56 = por %p54, %p55
      %p57 = scmp.ne.s32.totalorder %s46, %s49
      %p58 = scmp.eq.s32.totalorder %s18, 1
      %p59 = por %p57, %p58
      %p60 = scmp.ne.s32.totalorder %s49, %s50
      %p61 = scmp.eq.s32.totalorder %s18, 0
      %p62 = por %p60, %p61
      %p63 = scmp.ne.s32.totalorder %s49, %s50
      %p64 = scmp.eq.s32.totalorder %s19, 1
      %p65 = por %p63, %p64
      %p67 = scmp.ne.s32.totalorder %s50, %s66
      %p68 = scmp.eq.s32.totalorder %s19, 0
      %p69 = por %p67, %p68
      %s70 = ssub.s32 %s20, %s39
      %s71 = ssub.s32 %s21, %s35
      %s72 = sor.u32 %s70, %s71
      %s73 = ssub.s32 %s22, %s31
      %s74 = sor.u32 %s72, %s73
      %p75 = scmp.eq.s32.totalorder %s74, 0
      %s77 = sadd.s32 %s76, 1
      %s78 = scalar_select %p75, %s76, %s77
      %p81 = pneg %p75
      %p82 = scmp.eq.s32.totalorder %s13, 1
      %p83 = por %p81, %p82
      %p84 = scmp.ne.s32.totalorder %s76, %s79
      %p85 = scmp.eq.s32.totalorder %s13, 0
      %p86 = por %p84, %p85
      %p87 = scmp.ne.s32.totalorder %s76, %s79
      %p88 = scmp.eq.s32.totalorder %s18, 1
      %p89 = por %p87, %p88
      %p90 = scmp.ne.s32.totalorder %s79, %s80
      %p91 = scmp.eq.s32.totalorder %s18, 0
      %p92 = por %p90, %p91
      %p93 = scmp.ne.s32.totalorder %s79, %s80
      %p94 = scmp.eq.s32.totalorder %s19, 1
      %p95 = por %p93, %p94
      %p97 = scmp.ne.s32.totalorder %s80, %s96
      %p98 = scmp.eq.s32.totalorder %s19, 0
      %p99 = por %p97, %p98
      %p100 = scmp.le.s32.totalorder 1, %s13
      %p101 = scmp.lt.s32.totalorder %s13, 3
      %p102 = pnand %p100, %p101
      %p103 = pneg %p102
      // Predicated region
      $region9: #{tpu_custom_call.1} parent=5 // pred_check
        _
      $region10: #{tpu_custom_call.1} parent=5 // pred_check_branch
        %105 = sbr.rel (%p102) target = $region12
      $region11: #{tpu_custom_call.1} parent=5 // pred_region
        %s106 = ssub.s32 %s13, 1
      $region12: #{tpu_custom_call.1} parent=5 // pred_fallthru
        _
      %p107 = scmp.lt.s32.totalorder %s13, 2
      // Predicated region
      $region13: #{tpu_custom_call.1} parent=5 // pred_check
        %p108 = pneg %p107
      $region14: #{tpu_custom_call.1} parent=5 // pred_check_branch
        %110 = sbr.rel (%p108) target = $region16
      $region15: #{tpu_custom_call.1} parent=5 // pred_region
        // Predicated region
        $region17: #{tpu_custom_call.1} parent=15 // pred_check
          %p111 = pneg %p56
        $region18: #{tpu_custom_call.1} parent=15 // pred_check_branch
          %113 = sbr.rel (%p111) target = $region20
        $region19: #{tpu_custom_call.1} parent=15 // pred_region
          %s114 = sand.u32 %s46, 1
          %s115 = scalar_lea.sflag [#allocation3], %s114
          %s116 = sand.u32 %s46, 1
          %s117 = smul.addr %s116, 64
          %s118 = scalar_lea.vmem [#allocation2], %s117
          %s119 = smul.u32 4, %s21
          %s121 = ssub.s32 1024, 1024
          %122 = vsyncadd %s115, %s121
          %s123 = smul.addr %s119, 2
          %s124 = sadd.s32 %s22, %s123
          %s125 = smul.addr %s20, 8
          %s126 = sadd.s32 %s124, %s125
          %s127 = smul.addr %s126, 128
          %s128 = scalar_lea.hbm %s0, %s127
          %s129 = sshll.u32 %s118, 4
          %s130 = int_to_ptr.vmem [resolvable:$true] %s129
          %135 = dma.hbm_to_vmem [thread:$0]  %s128, 1024, %s130, %s115, 128, 128, 8
        $region20: #{tpu_custom_call.1} parent=15 // pred_fallthru
          _
      $region16: #{tpu_custom_call.1} parent=5 // pred_fallthru
        _
      %p136 = scmp.le.s32.totalorder 1, %s13
      %p137 = scmp.lt.s32.totalorder %s13, 3
      %p138 = pnand %p136, %p137
      %p139 = pneg %p138
      // Predicated region
      $region21: #{tpu_custom_call.1} parent=5 // pred_check
        _
      $region22: #{tpu_custom_call.1} parent=5 // pred_check_branch
        %141 = sbr.rel (%p138) target = $region24
      $region23: #{tpu_custom_call.1} parent=5 // pred_region
        %s142 = ssub.s32 %s13, 1
        %s143 = sand.u32 %s49, 1
        %s144 = scalar_lea.sflag [#allocation3], %s143
        %s145 = sand.u32 %s49, 1
        %s146 = smul.addr %s145, 64
        %s147 = scalar_lea.vmem [#allocation2], %s146
        // Predicated region
        $region25: #{tpu_custom_call.1} parent=23 // pred_check
          %p148 = pneg %p62
        $region26: #{tpu_custom_call.1} parent=23 // pred_check_branch
          %150 = sbr.rel (%p148) target = $region28
        $region27: #{tpu_custom_call.1} parent=23 // pred_region
          %151 = dma.done %s144, 1024
        $region28: #{tpu_custom_call.1} parent=23 // pred_fallthru
          _
        %s152 = sand.u32 %s49, 1
        %s153 = scalar_lea.sflag [#allocation3], %s152
        %s154 = sand.u32 %s49, 1
        %s155 = smul.addr %s154, 64
        %s156 = scalar_lea.vmem [#allocation2], %s155
        %p157 = pneg %p62
        %p158 = pneg %p59
        %p159 = pneg %p92
        %p160 = pneg %p89
        %s161 = sand.u32 %s79, 1
        %s162 = scalar_lea.sflag [#allocation4], %s161
        %s163 = sand.u32 %s79, 1
        %s164 = smul.addr %s163, 32
        %s165 = scalar_lea.vmem [#allocation5], %s164
        %s166 = smul.u32 4, %s24
        %s167 = smul.u32 4, %s24
        %v168 = vld [vmem:[%s147] sm:$0x1]
        %v169 = vld [vmem:[%s147 + $0x10] sm:$0x1]
        %v170 = vld [vmem:[%s147 + $0x20] sm:$0x1]
        %v171 = vld [vmem:[%s147 + $0x30] sm:$0x1]
        %v172 = vld [vmem:[%s147 + $0x1] sm:$0x1]
        %v173 = vld [vmem:[%s147 + $0x11] sm:$0x1]
        %v174 = vld [vmem:[%s147 + $0x21] sm:$0x1]
        %v175 = vld [vmem:[%s147 + $0x31] sm:$0x1]
        %v176 = vadd.f32 %v168, %v172
        %v177 = vadd.f32 %v169, %v173
        %v178 = vadd.f32 %v170, %v174
        %v179 = vadd.f32 %v171, %v175
        %v180 = vmul.f32 %v176, 0.5
        %v181 = vmul.f32 %v177, 0.5
        %v182 = vmul.f32 %v178, 0.5
        %v183 = vmul.f32 %v179, 0.5
        %vm184 = vcmask 122880
        %185 = vst.msk [vmem:[%s165] sm:$0x1] %vm184, %v180
        %186 = vst.msk [vmem:[%s165 + $0x8] sm:$0x1] %vm184, %v181
        %187 = vst.msk [vmem:[%s165 + $0x10] sm:$0x1] %vm184, %v182
        %188 = vst.msk [vmem:[%s165 + $0x18] sm:$0x1] %vm184, %v183
        %v189 = vld [vmem:[%s147 + $0x2] sm:$0x1]
        %v190 = vld [vmem:[%s147 + $0x12] sm:$0x1]
        %v191 = vld [vmem:[%s147 + $0x22] sm:$0x1]
        %v192 = vld [vmem:[%s147 + $0x32] sm:$0x1]
        %v193 = vld [vmem:[%s147 + $0x3] sm:$0x1]
        %v194 = vld [vmem:[%s147 + $0x13] sm:$0x1]
        %v195 = vld [vmem:[%s147 + $0x23] sm:$0x1]
        %v196 = vld [vmem:[%s147 + $0x33] sm:$0x1]
        %v197 = vadd.f32 %v189, %v193
        %v198 = vadd.f32 %v190, %v194
        %v199 = vadd.f32 %v191, %v195
        %v200 = vadd.f32 %v192, %v196
        %v201 = vmul.f32 %v197, 0.5
        %v202 = vmul.f32 %v198, 0.5
        %v203 = vmul.f32 %v199, 0.5
        %v204 = vmul.f32 %v200, 0.5
        %205 = vst.msk [vmem:[%s165 + $0x1] sm:$0x1] %vm184, %v201
        %206 = vst.msk [vmem:[%s165 + $0x9] sm:$0x1] %vm184, %v202
        %207 = vst.msk [vmem:[%s165 + $0x11] sm:$0x1] %vm184, %v203
        %208 = vst.msk [vmem:[%s165 + $0x19] sm:$0x1] %vm184, %v204
        %v209 = vld [vmem:[%s147 + $0x4] sm:$0x1]
        %v210 = vld [vmem:[%s147 + $0x14] sm:$0x1]
        %v211 = vld [vmem:[%s147 + $0x24] sm:$0x1]
        %v212 = vld [vmem:[%s147 + $0x34] sm:$0x1]
        %v213 = vld [vmem:[%s147 + $0x5] sm:$0x1]
        %v214 = vld [vmem:[%s147 + $0x15] sm:$0x1]
        %v215 = vld [vmem:[%s147 + $0x25] sm:$0x1]
        %v216 = vld [vmem:[%s147 + $0x35] sm:$0x1]
        %v217 = vadd.f32 %v209, %v213
        %v218 = vadd.f32 %v210, %v214
        %v219 = vadd.f32 %v211, %v215
        %v220 = vadd.f32 %v212, %v216
        %v221 = vmul.f32 %v217, 0.5
        %v222 = vmul.f32 %v218, 0.5
        %v223 = vmul.f32 %v219, 0.5
        %v224 = vmul.f32 %v220, 0.5
        %225 = vst.msk [vmem:[%s165 + $0x2] sm:$0x1] %vm184, %v221
        %226 = vst.msk [vmem:[%s165 + $0xa] sm:$0x1] %vm184, %v222
        %227 = vst.msk [vmem:[%s165 + $0x12] sm:$0x1] %vm184, %v223
        %228 = vst.msk [vmem:[%s165 + $0x1a] sm:$0x1] %vm184, %v224
        %v229 = vld [vmem:[%s147 + $0x6] sm:$0x1]
        %v230 = vld [vmem:[%s147 + $0x16] sm:$0x1]
        %v231 = vld [vmem:[%s147 + $0x26] sm:$0x1]
        %v232 = vld [vmem:[%s147 + $0x36] sm:$0x1]
        %v233 = vld [vmem:[%s147 + $0x7] sm:$0x1]
        %v234 = vld [vmem:[%s147 + $0x17] sm:$0x1]
        %v235 = vld [vmem:[%s147 + $0x27] sm:$0x1]
        %v236 = vld [vmem:[%s147 + $0x37] sm:$0x1]
        %v237 = vadd.f32 %v229, %v233
        %v238 = vadd.f32 %v230, %v234
        %v239 = vadd.f32 %v231, %v235
        %v240 = vadd.f32 %v232, %v236
        %v241 = vmul.f32 %v237, 0.5
        %v242 = vmul.f32 %v238, 0.5
        %v243 = vmul.f32 %v239, 0.5
        %v244 = vmul.f32 %v240, 0.5
        %245 = vst.msk [vmem:[%s165 + $0x3] sm:$0x1] %vm184, %v241
        %246 = vst.msk [vmem:[%s165 + $0xb] sm:$0x1] %vm184, %v242
        %247 = vst.msk [vmem:[%s165 + $0x13] sm:$0x1] %vm184, %v243
        %248 = vst.msk [vmem:[%s165 + $0x1b] sm:$0x1] %vm184, %v244
        %v249 = vld [vmem:[%s147 + $0x8] sm:$0x1]
        %v250 = vld [vmem:[%s147 + $0x18] sm:$0x1]
        %v251 = vld [vmem:[%s147 + $0x28] sm:$0x1]
        %v252 = vld [vmem:[%s147 + $0x38] sm:$0x1]
        %v253 = vld [vmem:[%s147 + $0x9] sm:$0x1]
        %v254 = vld [vmem:[%s147 + $0x19] sm:$0x1]
        %v255 = vld [vmem:[%s147 + $0x29] sm:$0x1]
        %v256 = vld [vmem:[%s147 + $0x39] sm:$0x1]
        %v257 = vadd.f32 %v249, %v253
        %v258 = vadd.f32 %v250, %v254
        %v259 = vadd.f32 %v251, %v255
        %v260 = vadd.f32 %v252, %v256
        %v261 = vmul.f32 %v257, 0.5
        %v262 = vmul.f32 %v258, 0.5
        %v263 = vmul.f32 %v259, 0.5
        %v264 = vmul.f32 %v260, 0.5
        %265 = vst.msk [vmem:[%s165 + $0x4] sm:$0x1] %vm184, %v261
        %266 = vst.msk [vmem:[%s165 + $0xc] sm:$0x1] %vm184, %v262
        %267 = vst.msk [vmem:[%s165 + $0x14] sm:$0x1] %vm184, %v263
        %268 = vst.msk [vmem:[%s165 + $0x1c] sm:$0x1] %vm184, %v264
        %v269 = vld [vmem:[%s147 + $0xa] sm:$0x1]
        %v270 = vld [vmem:[%s147 + $0x1a] sm:$0x1]
        %v271 = vld [vmem:[%s147 + $0x2a] sm:$0x1]
        %v272 = vld [vmem:[%s147 + $0x3a] sm:$0x1]
        %v273 = vld [vmem:[%s147 + $0xb] sm:$0x1]
        %v274 = vld [vmem:[%s147 + $0x1b] sm:$0x1]
        %v275 = vld [vmem:[%s147 + $0x2b] sm:$0x1]
        %v276 = vld [vmem:[%s147 + $0x3b] sm:$0x1]
        %v277 = vadd.f32 %v269, %v273
        %v278 = vadd.f32 %v270, %v274
        %v279 = vadd.f32 %v271, %v275
        %v280 = vadd.f32 %v272, %v276
        %v281 = vmul.f32 %v277, 0.5
        %v282 = vmul.f32 %v278, 0.5
        %v283 = vmul.f32 %v279, 0.5
        %v284 = vmul.f32 %v280, 0.5
        %285 = vst.msk [vmem:[%s165 + $0x5] sm:$0x1] %vm184, %v281
        %286 = vst.msk [vmem:[%s165 + $0xd] sm:$0x1] %vm184, %v282
        %287 = vst.msk [vmem:[%s165 + $0x15] sm:$0x1] %vm184, %v283
        %288 = vst.msk [vmem:[%s165 + $0x1d] sm:$0x1] %vm184, %v284
        %v289 = vld [vmem:[%s147 + $0xc] sm:$0x1]
        %v290 = vld [vmem:[%s147 + $0x1c] sm:$0x1]
        %v291 = vld [vmem:[%s147 + $0x2c] sm:$0x1]
        %v292 = vld [vmem:[%s147 + $0x3c] sm:$0x1]
        %v293 = vld [vmem:[%s147 + $0xd] sm:$0x1]
        %v294 = vld [vmem:[%s147 + $0x1d] sm:$0x1]
        %v295 = vld [vmem:[%s147 + $0x2d] sm:$0x1]
        %v296 = vld [vmem:[%s147 + $0x3d] sm:$0x1]
        %v297 = vadd.f32 %v289, %v293
        %v298 = vadd.f32 %v290, %v294
        %v299 = vadd.f32 %v291, %v295
        %v300 = vadd.f32 %v292, %v296
        %v301 = vmul.f32 %v297, 0.5
        %v302 = vmul.f32 %v298, 0.5
        %v303 = vmul.f32 %v299, 0.5
        %v304 = vmul.f32 %v300, 0.5
        %305 = vst.msk [vmem:[%s165 + $0x6] sm:$0x1] %vm184, %v301
        %306 = vst.msk [vmem:[%s165 + $0xe] sm:$0x1] %vm184, %v302
        %307 = vst.msk [vmem:[%s165 + $0x16] sm:$0x1] %vm184, %v303
        %308 = vst.msk [vmem:[%s165 + $0x1e] sm:$0x1] %vm184, %v304
        %v309 = vld [vmem:[%s147 + $0xe] sm:$0x1]
        %v310 = vld [vmem:[%s147 + $0x1e] sm:$0x1]
        %v311 = vld [vmem:[%s147 + $0x2e] sm:$0x1]
        %v312 = vld [vmem:[%s147 + $0x3e] sm:$0x1]
        %v313 = vld [vmem:[%s147 + $0xf] sm:$0x1]
        %v314 = vld [vmem:[%s147 + $0x1f] sm:$0x1]
        %v315 = vld [vmem:[%s147 + $0x2f] sm:$0x1]
        %v316 = vld [vmem:[%s147 + $0x3f] sm:$0x1]
        %v317 = vadd.f32 %v309, %v313
        %v318 = vadd.f32 %v310, %v314
        %v319 = vadd.f32 %v311, %v315
        %v320 = vadd.f32 %v312, %v316
        %v321 = vmul.f32 %v317, 0.5
        %v322 = vmul.f32 %v318, 0.5
        %v323 = vmul.f32 %v319, 0.5
        %v324 = vmul.f32 %v320, 0.5
        %325 = vst.msk [vmem:[%s165 + $0x7] sm:$0x1] %vm184, %v321
        %326 = vst.msk [vmem:[%s165 + $0xf] sm:$0x1] %vm184, %v322
        %327 = vst.msk [vmem:[%s165 + $0x17] sm:$0x1] %vm184, %v323
        %328 = vst.msk [vmem:[%s165 + $0x1f] sm:$0x1] %vm184, %v324
        %s329 = sand.u32 %s79, 1
        %s330 = scalar_lea.sflag [#allocation4], %s329
        %s331 = sand.u32 %s79, 1
        %s332 = smul.addr %s331, 32
        %s333 = scalar_lea.vmem [#allocation5], %s332
        // Predicated region
        $region29: #{tpu_custom_call.1} parent=23 // pred_check
          %p334 = pneg %p89
        $region30: #{tpu_custom_call.1} parent=23 // pred_check_branch
          %336 = sbr.rel (%p334) target = $region32
        $region31: #{tpu_custom_call.1} parent=23 // pred_region
          %s337 = smul.u32 4, %s24
          %s339 = ssub.s32 512, 512
          %340 = vsyncadd %s330, %s339
          %s341 = sadd.s32 %s25, %s337
          %s342 = smul.addr %s23, 4
          %s343 = sadd.s32 %s341, %s342
          %s344 = smul.addr %s343, 128
          %s345 = scalar_lea.hbm %s1, %s344
          %s346 = sshll.u32 %s333, 4
          %s347 = int_to_ptr.vmem [resolvable:$true] %s346
          %352 = dma.vmem_to_hbm [thread:$0]  %s347, 512, %s345, %s330, 128, 128, 8
        $region32: #{tpu_custom_call.1} parent=23 // pred_fallthru
          _
      $region24: #{tpu_custom_call.1} parent=5 // pred_fallthru
        _
      %p353 = scmp.le.s32.totalorder 2, %s13
      // Predicated region
      $region33: #{tpu_custom_call.1} parent=5 // pred_check
        %p354 = pneg %p353
      $region34: #{tpu_custom_call.1} parent=5 // pred_check_branch
        %356 = sbr.rel (%p354) target = $region36
      $region35: #{tpu_custom_call.1} parent=5 // pred_region
        %s357 = ssub.s32 %s13, 2
        // Predicated region
        $region37: #{tpu_custom_call.1} parent=35 // pred_check
          %p358 = pneg %p95
        $region38: #{tpu_custom_call.1} parent=35 // pred_check_branch
          %360 = sbr.rel (%p358) target = $region40
        $region39: #{tpu_custom_call.1} parent=35 // pred_region
          %s361 = sand.u32 %s80, 1
          %s362 = scalar_lea.sflag [#allocation4], %s361
          %s363 = sand.u32 %s80, 1
          %s364 = smul.addr %s363, 32
          %s365 = scalar_lea.vmem [#allocation5], %s364
          %366 = dma.done %s362, 512
        $region40: #{tpu_custom_call.1} parent=35 // pred_fallthru
          _
      $region36: #{tpu_custom_call.1} parent=5 // pred_fallthru
        _
    $region6: #{tpu_custom_call.1} parent=1 // loop_footer
      %s17 = sadd.s32 1, %s13
    $region7: #{tpu_custom_call.1} parent=1 // loop_footer_branch
      %12 = sbr.rel target = $region3
    $region8: #{tpu_custom_call.1} parent=1 // loop_exit
      _
    %367 = vsyncpa [#allocation3], 1
    %s368 = scalar_lea.sflag [#allocation3], 1
    %369 = vsyncpa %s368, 1
    %370 = vsyncpa [#allocation4], 1
    %s371 = scalar_lea.sflag [#allocation4], 1
    %372 = vsyncpa %s371, 1

</llo_original>
